<compile_context>
chip_gen: v7x
topology: tpu7x:2x2x1
jax: 0.10.0
libtpu: 0.0.40
codegen_flags: <defaults>
</compile_context>

<pallas_src>
import jax
import jax.numpy as jnp
from jax import lax
from jax.experimental import pallas as pl
from jax.experimental.pallas import tpu as pltpu

LANE = 128            # lane width
_MAX_BM = 8192        # hard ceiling on block rows
_CHUNK_ROWS = 512     # in-kernel accumulation chunk (bounds temp live range)
_NATIVE_STREAM = (jnp.dtype(jnp.float32), jnp.dtype(jnp.bfloat16),
                  jnp.dtype(jnp.float16))


# --------------------------- hardware-aware sizing ---------------------------
def _vmem_budget_bytes():
    """Byte budget for the double-buffered input/output streams.

    v6e/v7x default scoped VMEM is 32 MiB -> use 16 MiB for stream buffers;
    v5e (and unknown chips) only expose 16 MiB by default -> use 8 MiB.
    """
    try:
        kind = jax.devices()[0].device_kind.lower()
    except Exception:
        kind = ""
    if ("v6" in kind) or ("v7" in kind) or ("7x" in kind):
        return 16 * 1024 * 1024
    return 8 * 1024 * 1024


def _stream_dtype(dt):
    dt = jnp.dtype(dt)
    return dt if dt in _NATIVE_STREAM else jnp.dtype(jnp.float32)


def _choose_bm(rows, gran, bytes_per_row, cap_rows=None):
    """Largest block height (multiple of `gran`, <= rows) that fits the budget."""
    budget = _vmem_budget_bytes()
    cap = max(budget // max(bytes_per_row, 1), gran)
    if cap_rows is not None:                 # testing / tuning hook
        cap = max(min(cap, int(cap_rows)), gran)
    cap = min(cap, _MAX_BM)
    bm = min(cap, rows)
    if bm >= _CHUNK_ROWS:
        bm -= bm % _CHUNK_ROWS               # multiple of the chunk size
    else:
        bm = max(bm - bm % gran, gran)
    return bm


def _as_tiles(x, rows_p, dtype):
    """(rows_p, LANE) lane-dense view; zero-copy when already lane-aligned."""
    flat = jnp.ravel(x)
    if flat.dtype != jnp.dtype(dtype):
        flat = flat.astype(dtype)
    total = rows_p * LANE
    if flat.size != total:
        # Padding zeros contribute exactly 0 to smooth-L1 (and weight pad is 0).
        # TODO(synk): main/tail split to avoid this full-tensor pad copy for
        # non-lane-aligned inputs.
        flat = jnp.pad(flat, (0, total - flat.size))
    return flat.reshape(rows_p, LANE)


# --------------------------- kernels -----------------------------------------
def _make_none_kernel(beta, scale, bm, chunk, has_weight, has_scalar):
    half_over_beta = 0.5 / beta
    half_beta = 0.5 * beta
    n_chunks = bm // chunk

    def kernel(*refs):
        it = iter(refs)
        p_ref = next(it)
        t_ref = next(it)
        w_ref = next(it) if has_weight else None
        s_ref = next(it) if has_scalar else None
        o_ref = next(it)

        if s_ref is not None:
            dyn_scale = s_ref[0].astype(jnp.float32) * scale   # hoisted

        def chunk_body(c, carry):
            r0 = c * chunk
            if not isinstance(r0, int):
                r0 = pl.multiple_of(r0, chunk)
            p = p_ref[pl.ds(r0, chunk), :].astype(jnp.float32)
            t = t_ref[pl.ds(r0, chunk), :].astype(jnp.float32)
            diff = jnp.abs(p - t)
            loss = jnp.where(diff < beta, half_over_beta * diff * diff,
                             diff - half_beta)
            if w_ref is not None:
                loss = loss * w_ref[pl.ds(r0, chunk), :].astype(jnp.float32)
            if s_ref is not None:
                loss = loss * dyn_scale
            elif scale != 1.0:
                loss = loss * scale
            o_ref[pl.ds(r0, chunk), :] = loss.astype(o_ref.dtype)
            return carry

        if n_chunks == 1:
            chunk_body(0, 0)
        else:
            lax.fori_loop(0, n_chunks, chunk_body, 0)

    return kernel


def _make_sum_kernel(beta, bm, chunk, has_weight, needs_mask, rows_valid,
                     n_inner, grid_m, dup):
    half_over_beta = 0.5 / beta
    half_beta = 0.5 * beta
    n_chunks = bm // chunk
    nfold = chunk // 8

    def kernel(*refs):
        it = iter(refs)
        p_ref = next(it)
        t_ref = next(it)
        w_ref = next(it) if has_weight else None
        o_ref = next(it)

        i = pl.program_id(0)
        j = pl.program_id(1)

        @pl.when(j == 0)
        def _():
            o_ref[...] = jnp.zeros_like(o_ref)

        block_lin = i * n_inner + j                     # unclamped linear block
        block_idx = jnp.minimum(block_lin, grid_m - 1)  # matches index_map clamp
        row0 = block_idx * bm

        if needs_mask:
            if dup:
                # Duplicate (clamped) block contributes nothing.
                bound = jnp.where(block_lin < grid_m, rows_valid, 0)
            else:
                bound = rows_valid
            local = lax.broadcasted_iota(jnp.int32, (chunk, LANE), 0)

        def chunk_body(c, carry):
            r0 = c * chunk
            if not isinstance(r0, int):
                r0 = pl.multiple_of(r0, chunk)
            p = p_ref[pl.ds(r0, chunk), :].astype(jnp.float32)
            t = t_ref[pl.ds(r0, chunk), :].astype(jnp.float32)
            diff = jnp.abs(p - t)
            loss = jnp.where(diff < beta, half_over_beta * diff * diff,
                             diff - half_beta)
            if w_ref is not None:
                loss = loss * w_ref[pl.ds(r0, chunk), :].astype(jnp.float32)
            if needs_mask:
                loss = jnp.where((row0 + r0 + local) < bound, loss, 0.0)
            # Fold (chunk, 128) -> resident (8, 128) block with pure-VPU adds;
            # the single cross-lane reduction happens once in the wrapper.
            o_ref[...] += jnp.sum(loss.reshape(nfold, 8, LANE), axis=0)
            return carry

        if n_chunks == 1:
            chunk_body(0, 0)
        else:
            lax.fori_loop(0, n_chunks, chunk_body, 0)

    return kernel


# --------------------------- module -------------------------------------------
class SmoothL1Loss:
    """JAX/Pallas port of mmdet SmoothL1Loss (forward only, no parameters)."""

    def __init__(self, beta=1.0, reduction='mean', loss_weight=1.0):
        assert beta > 0
        self.beta = float(beta)
        self.reduction = reduction
        self.loss_weight = float(loss_weight)
        self._bm_cap_rows = None   # optional testing/tuning cap on block rows

    def __call__(self, pred, target, weight=None, avg_factor=None,
                 reduction_override=None):
        assert reduction_override in (None, 'none', 'mean', 'sum')
        reduction = reduction_override if reduction_override else self.reduction

        pred = jnp.asarray(pred)
        target = jnp.asarray(target)
        assert pred.shape == target.shape and pred.size > 0
        orig_shape = pred.shape
        numel = int(pred.size)

        p_dt = _stream_dtype(pred.dtype)
        t_dt = _stream_dtype(target.dtype)

        # ---- weight handling -------------------------------------------------
        scalar_w_val = None     # concrete python float
        scalar_w_dyn = None     # traced scalar (scalar weight under jit)
        w_arr = None            # full-size weight streamed through the kernel
        if weight is not None:
            w = jnp.asarray(weight)
            if w.size == 1:
                try:
                    scalar_w_val = float(jax.device_get(w).reshape(()))
                except Exception:
                    scalar_w_dyn = w.reshape((1,)).astype(jnp.float32)
            else:
                if w.shape != orig_shape:
                    # TODO(synk): stream compact broadcastable weights (e.g.
                    # per-sample (N,1,1,1)) instead of materializing them.
                    w = jnp.broadcast_to(w, orig_shape)
                if w.dtype == jnp.bool_ or jnp.issubdtype(w.dtype, jnp.integer):
                    w = w.astype(jnp.bfloat16)   # binary masks: half the bytes
                elif jnp.dtype(w.dtype) not in _NATIVE_STREAM:
                    w = w.astype(jnp.float32)
                w_arr = w
        has_w = w_arr is not None

        # ---- layout ------------------------------------------------------------
        stream_dts = [p_dt, t_dt] + ([jnp.dtype(w_arr.dtype)] if has_w else [])
        out_dt = p_dt
        gran = 16 if any(jnp.dtype(d).itemsize == 2 for d in stream_dts) else 8

        rows_arr = pl.cdiv(numel, LANE)
        rows_p = max(rows_arr, gran)          # tiny inputs: pad up to one tile
        needs_pad = rows_p * LANE != numel    # pad zeros contribute 0 loss

        per_row = sum(jnp.dtype(d).itemsize for d in stream_dts)
        if reduction == 'none':
            per_row += jnp.dtype(out_dt).itemsize
        bytes_per_row = 2 * LANE * per_row    # x2: double-buffered pipeline
        bm = _choose_bm(rows_p, gran, bytes_per_row, self._bm_cap_rows)
        chunk = _CHUNK_ROWS if (bm >= _CHUNK_ROWS and bm % _CHUNK_ROWS == 0) else bm
        grid_m = pl.cdiv(rows_p, bm)

        inputs = [_as_tiles(pred, rows_p, p_dt),
                  _as_tiles(target, rows_p, t_dt)]
        if has_w:
            inputs.append(_as_tiles(w_arr, rows_p, w_arr.dtype))

        # ---- 'none' ------------------------------------------------------------
        if reduction == 'none':
            scale = self.loss_weight * (scalar_w_val
                                        if scalar_w_val is not None else 1.0)
            in_specs = [pl.BlockSpec((bm, LANE), lambda i: (i, 0))] * len(inputs)
            has_scalar = scalar_w_dyn is not None
            if has_scalar:
                in_specs.append(
                    pl.BlockSpec(memory_space=pltpu.MemorySpace.SMEM))
                inputs.append(scalar_w_dyn)
            out = pl.pallas_call(
                _make_none_kernel(self.beta, scale, bm, chunk, has_w,
                                  has_scalar),
                out_shape=jax.ShapeDtypeStruct((rows_p, LANE), out_dt),
                grid_spec=pltpu.PrefetchScalarGridSpec(
                    num_scalar_prefetch=0, grid=(grid_m,),
                    in_specs=in_specs,
                    out_specs=pl.BlockSpec((bm, LANE), lambda i: (i, 0))),
                compiler_params=pltpu.CompilerParams(
                    dimension_semantics=("parallel",)),
            )(*inputs)
            if needs_pad:
                # TODO(synk): main/tail split would avoid this un-pad slice too.
                return out.reshape(-1)[:numel].reshape(orig_shape)
            return out.reshape(orig_shape)

        # ---- 'sum' / 'mean': in-kernel partial sums ----------------------------
        if grid_m >= 2:
            # Always expose a 2-way parallel outer axis (keeps both v7x TCs busy).
            n_outer, n_inner = 2, pl.cdiv(grid_m, 2)
        else:
            n_outer, n_inner = 1, 1
        dup = (n_outer * n_inner != grid_m)          # odd block count
        needs_mask = (rows_p % bm != 0) or dup

        def in_map(i, j):
            # Clamp so the (possible) extra iteration re-reads the last block;
            # its contribution is masked to zero inside the kernel.
            return (jnp.minimum(i * n_inner + j, grid_m - 1), 0)

        partials = pl.pallas_call(
            _make_sum_kernel(self.beta, bm, chunk, has_w, needs_mask, rows_p,
                             n_inner, grid_m, dup),
            out_shape=jax.ShapeDtypeStruct((n_outer * 8, LANE), jnp.float32),
            grid_spec=pltpu.PrefetchScalarGridSpec(
                num_scalar_prefetch=0, grid=(n_outer, n_inner),
                in_specs=[pl.BlockSpec((bm, LANE), in_map)] * len(inputs),
                out_specs=pl.BlockSpec((8, LANE), lambda i, j: (i, 0))),
            compiler_params=pltpu.CompilerParams(
                dimension_semantics=("parallel", "arbitrary")),
        )(*inputs)
        total = jnp.sum(partials)
        if scalar_w_val is not None:
            total = total * scalar_w_val
        elif scalar_w_dyn is not None:
            total = total * scalar_w_dyn[0]

        if avg_factor is None:
            loss = total / numel if reduction == 'mean' else total
        else:
            if reduction == 'mean':
                loss = total / avg_factor
            else:
                raise ValueError(
                    'avg_factor can not be used with reduction="sum"')
        return self.loss_weight * loss


# --------------------------- reference & tests ---------------------------------
def _reference(pred, target, weight, beta, reduction, avg_factor, loss_weight):
    pred = jnp.asarray(pred, dtype=jnp.float32)
    target = jnp.asarray(target, dtype=jnp.float32)
    diff = jnp.abs(pred - target)
    loss = jnp.where(diff < beta, 0.5 * diff * diff / beta, diff - 0.5 * beta)
    if weight is not None:
        loss = loss * jnp.asarray(weight, dtype=jnp.float32)
    if avg_factor is None:
        if reduction == 'mean':
            loss = loss.mean()
        elif reduction == 'sum':
            loss = loss.sum()
    elif reduction == 'mean':
        loss = loss.sum() / avg_factor
    return loss_weight * loss


if __name__ == "__main__":
    key = jax.random.PRNGKey(0)
    keys = jax.random.split(key, 8)
    k1, k2, k3, k4, k5, k6, k7, k8 = keys

    # bbox-regression-like input mapped from an NCHW feature: (2, 4, 16, 16)
    pred = jax.random.normal(k1, (2, 4, 16, 16), dtype=jnp.float32)
    target = jax.random.normal(k2, (2, 4, 16, 16), dtype=jnp.float32)
    weight = (jax.random.uniform(k3, (2, 4, 16, 16)) > 0.3).astype(jnp.float32)

    module = SmoothL1Loss(beta=1.0, reduction='mean', loss_weight=2.0)

    # mean reduction (weighted, f32 weight stream)
    out = jax.block_until_ready(module(pred, target, weight=weight))
    ref = _reference(pred, target, weight, 1.0, 'mean', None, 2.0)
    assert jnp.allclose(out, ref, rtol=1e-5, atol=1e-5)

    # sum reduction (unweighted -> 2-input kernel)
    out = jax.block_until_ready(module(pred, target, reduction_override='sum'))
    ref = _reference(pred, target, None, 1.0, 'sum', None, 2.0)
    assert jnp.allclose(out, ref, rtol=1e-5, atol=1e-4)

    # mean with avg_factor (weighted)
    out = jax.block_until_ready(module(pred, target, weight=weight,
                                       avg_factor=123.0))
    ref = _reference(pred, target, weight, 1.0, 'mean', 123.0, 2.0)
    assert jnp.allclose(out, ref, rtol=1e-5, atol=1e-5)

    # no reduction (weighted) -- loss_weight folded into the kernel
    out = jax.block_until_ready(module(pred, target, weight=weight,
                                       reduction_override='none'))
    ref = _reference(pred, target, weight, 1.0, 'none', None, 2.0)
    assert out.shape == pred.shape
    assert jnp.allclose(out, ref, rtol=1e-5, atol=1e-5)

    # scalar weight: sum (folded into the final scalar)
    sw = jnp.asarray(0.5, dtype=jnp.float32)
    out = jax.block_until_ready(module(pred, target, weight=sw,
                                       reduction_override='sum'))
    ref = _reference(pred, target, sw, 1.0, 'sum', None, 2.0)
    assert jnp.allclose(out, ref, rtol=1e-5, atol=1e-4)

    # scalar weight: 'none' (folded into the in-kernel scale, no extra pass)
    sw2 = jnp.asarray(0.25, dtype=jnp.float32)
    out = jax.block_until_ready(module(pred, target, weight=sw2,
                                       reduction_override='none'))
    ref = _reference(pred, target, sw2, 1.0, 'none', None, 2.0)
    assert jnp.allclose(out, ref, rtol=1e-5, atol=1e-5)

    # bool mask weight streamed as bf16
    wbool = jax.random.uniform(k3, (2, 4, 16, 16)) > 0.3
    out = jax.block_until_ready(module(pred, target, weight=wbool))
    ref = _reference(pred, target, wbool, 1.0, 'mean', None, 2.0)
    assert jnp.allclose(out, ref, rtol=1e-5, atol=1e-5)

    # non-lane-aligned shape exercises the zero-pad fallback path
    p_small = jax.random.normal(k4, (3, 7, 5), dtype=jnp.float32)
    t_small = jax.random.normal(k5, (3, 7, 5), dtype=jnp.float32)
    out = jax.block_until_ready(module(p_small, t_small))
    ref = _reference(p_small, t_small, None, 1.0, 'mean', None, 2.0)
    assert jnp.allclose(out, ref, rtol=1e-5, atol=1e-5)

    # bf16 inputs streamed natively, upcast to f32 inside the kernel
    out = jax.block_until_ready(module(pred.astype(jnp.bfloat16),
                                       target.astype(jnp.bfloat16)))
    ref = _reference(pred.astype(jnp.bfloat16), target.astype(jnp.bfloat16),
                     None, 1.0, 'mean', None, 2.0)
    assert jnp.allclose(out, ref, rtol=1e-4, atol=1e-4)

    # lane-aligned but not block-divisible (2080 rows): zero-copy path with a
    # partial boundary block, chunked in-kernel accumulation, 2-way outer grid.
    p_big = jax.random.normal(k6, (8, 4, 64, 130), dtype=jnp.float32)
    t_big = jax.random.normal(k7, (8, 4, 64, 130), dtype=jnp.float32)
    out = jax.block_until_ready(module(p_big, t_big))
    ref = _reference(p_big, t_big, None, 1.0, 'mean', None, 2.0)
    assert jnp.allclose(out, ref, rtol=1e-4, atol=1e-4)
    out = jax.block_until_ready(module(p_big, t_big,
                                       reduction_override='none'))
    ref = _reference(p_big, t_big, None, 1.0, 'none', None, 2.0)
    assert jnp.allclose(out, ref, rtol=1e-5, atol=1e-5)

    # odd block count: exercises the clamped index map + duplicate-block mask
    mod_dup = SmoothL1Loss(beta=1.0, reduction='sum', loss_weight=1.5)
    mod_dup._bm_cap_rows = 16      # force 3 blocks of 16 rows over 40 rows
    p_odd = jax.random.normal(k8, (5, 8, 128), dtype=jnp.float32)
    t_odd = jax.random.normal(k1, (5, 8, 128), dtype=jnp.float32)
    out = jax.block_until_ready(mod_dup(p_odd, t_odd))
    ref = _reference(p_odd, t_odd, None, 1.0, 'sum', None, 1.5)
    assert jnp.allclose(out, ref, rtol=1e-5, atol=1e-4)
    out = jax.block_until_ready(mod_dup(p_odd, t_odd,
                                        reduction_override='none'))
    ref = _reference(p_odd, t_odd, None, 1.0, 'none', None, 1.5)
    assert jnp.allclose(out, ref, rtol=1e-5, atol=1e-5)

    print("KERNEL_OK")
</pallas_src>

<mosaic_0001>
module attributes {stable_mosaic.version = 11 : i64} {
  func.func @kernel(%arg0: i32, %arg1: i32, %arg2: memref<16x128xf32, #tpu.memory_space<vmem>>, %arg3: memref<16x128xf32, #tpu.memory_space<vmem>>, %arg4: memref<16x128xf32, #tpu.memory_space<vmem>>, %arg5: memref<8x128xf32, #tpu.memory_space<vmem>>) attributes {dimension_semantics = [#tpu.dimension_semantics<parallel>, #tpu.dimension_semantics<arbitrary>], iteration_bounds = array<i64: 1, 1>, scalar_prefetch = 0 : i64, scratch_operands = 0 : i64, tpu.core_type = #tpu.core_type<tc>, window_params = [{transform_indices = @transform_0, window_bounds = array<i64: 16, 128>}, {transform_indices = @transform_1, window_bounds = array<i64: 16, 128>}, {transform_indices = @transform_2, window_bounds = array<i64: 16, 128>}, {transform_indices = @transform_3, window_bounds = array<i64: 8, 128>}]} {
    %c0_i32 = arith.constant 0 : i32
    %0 = arith.cmpi eq, %arg1, %c0_i32 : i32
    %1 = arith.extui %0 : i1 to i32
    %c0_i32_0 = arith.constant 0 : i32
    %2 = arith.cmpi ne, %1, %c0_i32_0 : i32
    scf.if %2 {
      %cst_13 = arith.constant 0.000000e+00 : f32
      %22 = vector.broadcast %cst_13 : f32 to vector<8x128xf32>
      %c0_14 = arith.constant 0 : index
      %c0_15 = arith.constant 0 : index
      %23 = vector.load %arg5[%c0_14, %c0_15] : memref<8x128xf32, #tpu.memory_space<vmem>>, vector<8x128xf32>
      tpu.vector_store %arg5[%c0_14, %c0_15], %22 {strides = array<i32>} : memref<8x128xf32, #tpu.memory_space<vmem>>, vector<8x128xf32>,
    } else {
    }
    %c0 = arith.constant 0 : index
    %c0_1 = arith.constant 0 : index
    %3 = vector.load %arg2[%c0, %c0_1] : memref<16x128xf32, #tpu.memory_space<vmem>>, vector<16x128xf32>
    %c0_2 = arith.constant 0 : index
    %c0_3 = arith.constant 0 : index
    %4 = vector.load %arg3[%c0_2, %c0_3] : memref<16x128xf32, #tpu.memory_space<vmem>>, vector<16x128xf32>
    %5 = arith.subf %3, %4 : vector<16x128xf32>
    %6 = math.absf %5 : vector<16x128xf32>
    %cst = arith.constant 1.000000e+00 : f32
    %7 = vector.broadcast %cst : f32 to vector<16x128xf32>
    %8 = arith.cmpf olt, %6, %7 : vector<16x128xf32>
    %cst_4 = arith.constant 5.000000e-01 : f32
    %9 = vector.broadcast %cst_4 : f32 to vector<16x128xf32>
    %10 = arith.mulf %9, %6 : vector<16x128xf32>
    %11 = arith.mulf %10, %6 : vector<16x128xf32>
    %cst_5 = arith.constant 5.000000e-01 : f32
    %12 = vector.broadcast %cst_5 : f32 to vector<16x128xf32>
    %13 = arith.subf %6, %12 : vector<16x128xf32>
    %14 = arith.select %8, %11, %13 : vector<16x128xi1>, vector<16x128xf32>
    %c0_6 = arith.constant 0 : index
    %c0_7 = arith.constant 0 : index
    %15 = vector.load %arg4[%c0_6, %c0_7] : memref<16x128xf32, #tpu.memory_space<vmem>>, vector<16x128xf32>
    %16 = arith.mulf %14, %15 : vector<16x128xf32>
    %c0_8 = arith.constant 0 : index
    %c0_9 = arith.constant 0 : index
    %17 = vector.load %arg5[%c0_8, %c0_9] : memref<8x128xf32, #tpu.memory_space<vmem>>, vector<8x128xf32>
    %18 = vector.shape_cast %16 : vector<16x128xf32> to vector<2x8x128xf32>
    %cst_10 = arith.constant dense<0.000000e+00> : vector<8x128xf32>
    %19 = vector.multi_reduction <add>, %18, %cst_10 [0] : vector<2x8x128xf32> to vector<8x128xf32>
    %20 = arith.addf %17, %19 : vector<8x128xf32>
    %c0_11 = arith.constant 0 : index
    %c0_12 = arith.constant 0 : index
    %21 = vector.load %arg5[%c0_11, %c0_12] : memref<8x128xf32, #tpu.memory_space<vmem>>, vector<8x128xf32>
    tpu.vector_store %arg5[%c0_11, %c0_12], %20 {strides = array<i32>} : memref<8x128xf32, #tpu.memory_space<vmem>>, vector<8x128xf32>,
    return
  }
  func.func @transform_0(%arg0: i32, %arg1: i32) -> (i32, i32) {
    %c1_i32 = arith.constant 1 : i32
    %0 = arith.muli %arg0, %c1_i32 : i32
    %1 = arith.addi %0, %arg1 : i32
    %c0_i32 = arith.constant 0 : i32
    %2 = arith.minsi %1, %c0_i32 : i32
    %c0_i32_0 = arith.constant 0 : i32
    %c0_i32_1 = arith.constant 0 : i32
    return %2, %c0_i32_0 : i32, i32
  }
  func.func @transform_1(%arg0: i32, %arg1: i32) -> (i32, i32) {
    %c1_i32 = arith.constant 1 : i32
    %0 = arith.muli %arg0, %c1_i32 : i32
    %1 = arith.addi %0, %arg1 : i32
    %c0_i32 = arith.constant 0 : i32
    %2 = arith.minsi %1, %c0_i32 : i32
    %c0_i32_0 = arith.constant 0 : i32
    %c0_i32_1 = arith.constant 0 : i32
    return %2, %c0_i32_0 : i32, i32
  }
  func.func @transform_2(%arg0: i32, %arg1: i32) -> (i32, i32) {
    %c1_i32 = arith.constant 1 : i32
    %0 = arith.muli %arg0, %c1_i32 : i32
    %1 = arith.addi %0, %arg1 : i32
    %c0_i32 = arith.constant 0 : i32
    %2 = arith.minsi %1, %c0_i32 : i32
    %c0_i32_0 = arith.constant 0 : i32
    %c0_i32_1 = arith.constant 0 : i32
    return %2, %c0_i32_0 : i32, i32
  }
  func.func @transform_3(%arg0: i32, %arg1: i32) -> (i32, i32) {
    %c0_i32 = arith.constant 0 : i32
    %c0_i32_0 = arith.constant 0 : i32
    return %arg0, %c0_i32 : i32, i32
  }
}

</mosaic_0001>

<llo_original>
// kernel: tpu_custom_call.1
$region0: #{tpu_custom_call.1}
  #allocation0 [shape = 'u32[]', space=smem, size = 0x4, offset = 0x4, fixed_abs, tag = 'smem constant byte address 0x4 - core index']
  #allocation1 [shape = 'u32[144,128]{1,0:T(1,128)}', space=vmem, size = 0x12000, scoped, tag = 'internal scratch']
  %s0 = inlined_call_operand.hbm [shape: f32[16,128], index: 0, kind: input, shape index: {}]
  %s1 = inlined_call_operand.hbm [shape: f32[16,128], index: 1, kind: input, shape index: {}]
  %s2 = inlined_call_operand.hbm [shape: f32[16,128], index: 2, kind: input, shape index: {}]
  %s3 = inlined_call_operand.hbm [shape: f32[8,128], index: 3, kind: output, shape index: {}]
  %s4 = sld [smem:[#allocation0]]
  $region38: #{tpu_custom_call.1} parent=0
    _
  %s6 = ssub.s32 1, %s4
  %s7 = scalar_select 0, %s6, %s4
  $region1: #{tpu_custom_call.1} parent=0
    #allocation2 [shape = 'u8[8192]{0}', space=vmem, size = 0x2000, scoped, tag = 'input window, operand 0, single buffered']
    #allocation3 [shape = 's32[1]{0}', space=sflag, size = 0x4, scoped, tag = 'scoped memory for tpu_custom_call.1']
    #allocation4 [shape = 's32[1]{0}', space=sflag, size = 0x4, scoped, tag = 'scoped memory for tpu_custom_call.1']
    #allocation5 [shape = 'u8[8192]{0}', space=vmem, size = 0x2000, scoped, tag = 'input window, operand 1, single buffered']
    #allocation6 [shape = 's32[1]{0}', space=sflag, size = 0x4, scoped, tag = 'scoped memory for tpu_custom_call.1']
    #allocation7 [shape = 'u8[8192]{0}', space=vmem, size = 0x2000, scoped, tag = 'input window, operand 2, single buffered']
    #allocation8 [shape = 'u8[4096]{0}', space=vmem, size = 0x1000, scoped, tag = 'output window, operand 0, single buffered']
    %8 = vsyncpa [#allocation3], 0
    %9 = vsyncpa [#allocation6], 0
    %10 = vsyncpa [#allocation4], 0
    // Predicated region
    $region2: #{tpu_custom_call.1} parent=1 // pred_check
      _
    $region3: #{tpu_custom_call.1} parent=1 // pred_check_branch
      %12 = sbr.rel (0) target = $region5
    $region4: #{tpu_custom_call.1} parent=1 // pred_region
      %s13 = sadd.s32 0, 0
      %p14 = scmp.lt.s32.totalorder %s13, 0
      %s15 = scalar_select %p14, %s13, 0
      %s16 = smul.u32 2, %s15
      %s18 = ssub.s32 256, 256
      %19 = vsyncadd [#allocation3], %s18
      %s20 = smul.addr %s16, 128
      %s21 = scalar_lea.hbm %s0, %s20
      %s22 = sshll.u32 [#allocation2], 4
      %s23 = int_to_ptr.vmem [resolvable:$true] %s22
      %28 = dma.hbm_to_vmem [thread:$0]  %s21, 256, %s23, [#allocation3], 128, 128, 8
    $region5: #{tpu_custom_call.1} parent=1 // pred_fallthru
      _
    // Predicated region
    $region6: #{tpu_custom_call.1} parent=1 // pred_check
      _
    $region7: #{tpu_custom_call.1} parent=1 // pred_check_branch
      %30 = sbr.rel (0) target = $region9
    $region8: #{tpu_custom_call.1} parent=1 // pred_region
      %s31 = sadd.s32 0, 0
      %p32 = scmp.lt.s32.totalorder %s31, 0
      %s33 = scalar_select %p32, %s31, 0
      %s34 = smul.u32 2, %s33
      %s36 = ssub.s32 256, 256
      %37 = vsyncadd [#allocation6], %s36
      %s38 = smul.addr %s34, 128
      %s39 = scalar_lea.hbm %s1, %s38
      %s40 = sshll.u32 [#allocation5], 4
      %s41 = int_to_ptr.vmem [resolvable:$true] %s40
      %46 = dma.hbm_to_vmem [thread:$0]  %s39, 256, %s41, [#allocation6], 128, 128, 8
    $region9: #{tpu_custom_call.1} parent=1 // pred_fallthru
      _
    // Predicated region
    $region10: #{tpu_custom_call.1} parent=1 // pred_check
      _
    $region11: #{tpu_custom_call.1} parent=1 // pred_check_branch
      %48 = sbr.rel (0) target = $region13
    $region12: #{tpu_custom_call.1} parent=1 // pred_region
      %s49 = sadd.s32 0, 0
      %p50 = scmp.lt.s32.totalorder %s49, 0
      %s51 = scalar_select %p50, %s49, 0
      %s52 = smul.u32 2, %s51
      %s54 = ssub.s32 256, 256
      %55 = vsyncadd [#allocation6], %s54
      %s56 = smul.addr %s52, 128
      %s57 = scalar_lea.hbm %s2, %s56
      %s58 = sshll.u32 [#allocation7], 4
      %s59 = int_to_ptr.vmem [resolvable:$true] %s58
      %64 = dma.hbm_to_vmem [thread:$0]  %s57, 256, %s59, [#allocation6], 128, 128, 8
    $region13: #{tpu_custom_call.1} parent=1 // pred_fallthru
      _
    // Predicated region
    $region14: #{tpu_custom_call.1} parent=1 // pred_check
      _
    $region15: #{tpu_custom_call.1} parent=1 // pred_check_branch
      %66 = sbr.rel (0) target = $region17
    $region16: #{tpu_custom_call.1} parent=1 // pred_region
      %67 = dma.done [#allocation3], 256
    $region17: #{tpu_custom_call.1} parent=1 // pred_fallthru
      _
    // Predicated region
    $region18: #{tpu_custom_call.1} parent=1 // pred_check
      _
    $region19: #{tpu_custom_call.1} parent=1 // pred_check_branch
      %69 = sbr.rel (0) target = $region21
    $region20: #{tpu_custom_call.1} parent=1 // pred_region
      %70 = dma.done [#allocation6], 256
    $region21: #{tpu_custom_call.1} parent=1 // pred_fallthru
      _
    // Predicated region
    $region22: #{tpu_custom_call.1} parent=1 // pred_check
      _
    $region23: #{tpu_custom_call.1} parent=1 // pred_check_branch
      %72 = sbr.rel (0) target = $region25
    $region24: #{tpu_custom_call.1} parent=1 // pred_region
      %73 = dma.done [#allocation6], 256
    $region25: #{tpu_custom_call.1} parent=1 // pred_fallthru
      _
    %s74 = sadd.s32 0, 0
    %p75 = scmp.lt.s32.totalorder %s74, 0
    %s76 = scalar_select %p75, %s74, 0
    %s77 = smul.u32 2, %s76
    %s78 = sadd.s32 0, 0
    %p79 = scmp.lt.s32.totalorder %s78, 0
    %s80 = scalar_select %p79, %s78, 0
    %s81 = smul.u32 2, %s80
    %s82 = sadd.s32 0, 0
    %p83 = scmp.lt.s32.totalorder %s82, 0
    %s84 = scalar_select %p83, %s82, 0
    %s85 = smul.u32 2, %s84
    %p86 = scmp.eq.s32.totalorder 0, 0
    // Predicated region
    $region26: #{tpu_custom_call.1} parent=1 // pred_check
      %p87 = pneg %p86
    $region27: #{tpu_custom_call.1} parent=1 // pred_check_branch
      %89 = sbr.rel (%p87) target = $region29
    $region28: #{tpu_custom_call.1} parent=1 // pred_region
      %90 = vst [vmem:[#allocation8] sm:$0xff] 0.0
    $region29: #{tpu_custom_call.1} parent=1 // pred_fallthru
      _
    %v91 = vld [vmem:[#allocation2] sm:$0xff]
    %v92 = vld [vmem:[#allocation2 + $0x8] sm:$0xff]
    %v93 = vld [vmem:[#allocation5] sm:$0xff]
    %v94 = vld [vmem:[#allocation5 + $0x8] sm:$0xff]
    %v95 = vsub.f32 %v91, %v93
    %v96 = vsub.f32 %v92, %v94
    %v97 = vand.u32 2147483647, %v95
    %v98 = vand.u32 2147483647, %v96
    %vm99 = vcmp.lt.f32.partialorder %v97, 1.0
    %vm100 = vcmp.lt.f32.partialorder %v98, 1.0
    %v101 = vmul.f32 %v97, 0.5
    %v102 = vmul.f32 %v98, 0.5
    %v103 = vmul.f32 %v101, %v97
    %v104 = vmul.f32 %v102, %v98
    %v105 = vsub.f32 %v97, 0.5
    %v106 = vsub.f32 %v98, 0.5
    %v107 = vsel %vm99, %v103, %v105
    %v108 = vsel %vm100, %v104, %v106
    %v109 = vld [vmem:[#allocation7] sm:$0xff]
    %v110 = vld [vmem:[#allocation7 + $0x8] sm:$0xff]
    %v111 = vmul.f32 %v107, %v109
    %v112 = vmul.f32 %v108, %v110
    %v113 = vld [vmem:[#allocation8] sm:$0xff]
    %v114 = vadd.f32 %v111, %v112
    %v115 = vadd.f32 %v113, %v114
    %116 = vst [vmem:[#allocation8] sm:$0xff] %v115
    // Predicated region
    $region30: #{tpu_custom_call.1} parent=1 // pred_check
      _
    $region31: #{tpu_custom_call.1} parent=1 // pred_check_branch
      %118 = sbr.rel (0) target = $region33
    $region32: #{tpu_custom_call.1} parent=1 // pred_region
      %s120 = ssub.s32 128, 128
      %121 = vsyncadd [#allocation4], %s120
      %s123 = sshll.u32 [#allocation8], 4
      %s124 = int_to_ptr.vmem [resolvable:$true] %s123
      %126 = dma.vmem_to_hbm [thread:$0]  %s124, 128, %s3, [#allocation4]
    $region33: #{tpu_custom_call.1} parent=1 // pred_fallthru
      _
    // Predicated region
    $region34: #{tpu_custom_call.1} parent=1 // pred_check
      _
    $region35: #{tpu_custom_call.1} parent=1 // pred_check_branch
      %128 = sbr.rel (0) target = $region37
    $region36: #{tpu_custom_call.1} parent=1 // pred_region
      %129 = dma.done [#allocation4], 128
    $region37: #{tpu_custom_call.1} parent=1 // pred_fallthru
      _
    %130 = vsyncpa [#allocation3], 1
    %131 = vsyncpa [#allocation6], 1
    %132 = vsyncpa [#allocation4], 1

</llo_original>
